<compile_context>
chip_gen: v5e
topology: v5e:2x2
jax: 0.10.0
libtpu: 0.0.40
codegen_flags: <defaults>
</compile_context>

<pallas_src>
import functools

import numpy as np
import jax
import jax.numpy as jnp
from jax.experimental import pallas as pl
from jax.experimental.pallas import tpu as pltpu

LAYER_DIM = 8
COND_EMB_SIZE = 3
NUM_COND = 5
HIDDEN = 64
NEG_SLOPE = 0.01            # nn.LeakyReLU default
DEFAULT_BATCH_TILE = 1024   # rows per grid step (review: 1024-2048)


def _leaky_relu(v):
    return jnp.maximum(v, NEG_SLOPE * v)


def _round_up(n, m):
    return (n + m - 1) // m * m


def _choose_tiles(B, batch_tile):
    """Pick (batch_tile, padded_batch); tile is a multiple of 128 lanes."""
    B = max(int(B), 1)
    tb = _round_up(int(batch_tile), 128)
    b128 = _round_up(B, 128)
    tb = min(tb, b128)
    # v7x has 2 TensorCores; keep >= 2 "parallel" grid steps when batch allows
    # so the batch axis shards across both cores (irrelevant on v5e/v6e).
    if b128 >= 2 * 128:
        tb = min(tb, _round_up((B + 1) // 2, 128))
    b_pad = _round_up(B, tb)
    return tb, b_pad


def mlp_kernel(inT_ref, w1cT_ref, wmidT_ref, bmid_ref, w5T_ref, b5_ref, o_ref):
    """Feature-major 5-layer MLP on one batch tile.

    inT_ref:   (IN_FEATS, TB)      f32   rows: [x | t | one_hot(cond) | 1 | pad]
    w1cT_ref:  (HIDDEN, IN_FEATS)  bf16  cols: [w1x^T | w1t | (emb@w1e)^T | b1 | 0]
    wmidT_ref: (3, HIDDEN, HIDDEN) bf16  == stack(W2^T, W3^T, W4^T)
    bmid_ref:  (3, HIDDEN, 1)      f32
    w5T_ref:   (layer_dim, HIDDEN) bf16
    b5_ref:    (layer_dim, 1)      f32
    o_ref:     (layer_dim, TB)     f32
    """
    # Layer 1: x / t / cond-embedding / bias all fused into one K=16 matmul.
    inT = inT_ref[...].astype(jnp.bfloat16)
    h = jnp.dot(w1cT_ref[...], inT, preferred_element_type=jnp.float32)
    h = _leaky_relu(h)

    # Layers 2..4 (stacked 64x64 weights, statically unrolled).
    for i in range(3):
        h = _leaky_relu(
            jnp.dot(wmidT_ref[i], h.astype(jnp.bfloat16),
                    preferred_element_type=jnp.float32)
            + bmid_ref[i])

    # Output layer (lane-dense (layer_dim, TB) store).
    o_ref[...] = (jnp.dot(w5T_ref[...], h.astype(jnp.bfloat16),
                          preferred_element_type=jnp.float32)
                  + b5_ref[...]).astype(o_ref.dtype)


def prepare_params(params):
    """One-time repack of PyTorch-layout params into kernel-layout operands."""
    w1 = params["w1"].astype(jnp.float32)          # (layer_dim+1+3, HIDDEN)
    b1 = params["b1"].astype(jnp.float32)          # (HIDDEN,)
    emb = params["emb"].astype(jnp.float32)        # (NUM_COND, COND_EMB_SIZE)
    layer_dim = w1.shape[0] - 1 - COND_EMB_SIZE

    w1x = w1[:layer_dim]                           # (layer_dim, HIDDEN)
    w1t = w1[layer_dim]                            # (HIDDEN,)
    w1e = w1[layer_dim + 1:]                       # (COND_EMB_SIZE, HIDDEN)
    emb_cols = emb @ w1e                           # (NUM_COND, HIDDEN)

    in_rows = layer_dim + 1 + NUM_COND + 1         # + const-1 row carrying b1
    in_feats = _round_up(in_rows, 8)               # sublane-divisible

    w1c = jnp.zeros((HIDDEN, in_feats), jnp.float32)
    w1c = w1c.at[:, :layer_dim].set(w1x.T)
    w1c = w1c.at[:, layer_dim].set(w1t)
    w1c = w1c.at[:, layer_dim + 1:layer_dim + 1 + NUM_COND].set(emb_cols.T)
    w1c = w1c.at[:, layer_dim + 1 + NUM_COND].set(b1)   # bias via const-1 row

    return {
        "w1cT": w1c.astype(jnp.bfloat16),                            # (HIDDEN, in_feats)
        "wmidT": jnp.stack([params["w2"].T, params["w3"].T,
                            params["w4"].T]).astype(jnp.bfloat16),   # (3, HIDDEN, HIDDEN)
        "bmid": jnp.stack([params["b2"], params["b3"],
                           params["b4"]]).astype(jnp.float32).reshape(3, HIDDEN, 1),
        "w5T": params["w5"].T.astype(jnp.bfloat16),                  # (layer_dim, HIDDEN)
        "b5": params["b5"].astype(jnp.float32).reshape(-1, 1),       # (layer_dim, 1)
    }


@functools.partial(jax.jit, static_argnames=("tb",))
def _featmajor_forward(inT, prep, tb):
    """Run the MLP kernel on a prepared feature-major, padded input.

    inT: (in_feats, b_pad) f32 with b_pad % tb == 0.  Returns (layer_dim, b_pad) f32.
    """
    in_feats, b_pad = inT.shape
    layer_dim = prep["w5T"].shape[0]
    assert b_pad % tb == 0

    def tiled(rows):
        return pl.BlockSpec((rows, tb), lambda i: (0, i))

    def resident(shape):
        return pl.BlockSpec(shape, lambda i: (0,) * len(shape))

    return pl.pallas_call(
        mlp_kernel,
        out_shape=jax.ShapeDtypeStruct((layer_dim, b_pad), jnp.float32),
        grid=(b_pad // tb,),
        in_specs=[tiled(in_feats),
                  resident(prep["w1cT"].shape),
                  resident(prep["wmidT"].shape),
                  resident(prep["bmid"].shape),
                  resident(prep["w5T"].shape),
                  resident(prep["b5"].shape)],
        out_specs=tiled(layer_dim),
        compiler_params=pltpu.CompilerParams(
            dimension_semantics=("parallel",)),
    )(inT, prep["w1cT"], prep["wmidT"], prep["bmid"], prep["w5T"], prep["b5"])


@functools.partial(jax.jit, static_argnames=("batch_tile",))
def flow_matching_cond_forward(x, t, cond, prep, batch_tile=DEFAULT_BATCH_TILE):
    """Mirrors FlowMatchingCond.forward(x, t, cond)."""
    B, layer_dim = x.shape
    in_feats = prep["w1cT"].shape[1]
    tb, b_pad = _choose_tiles(B, batch_tile)

    # Fused feature-major input: [x^T | t^T | one_hot(cond)^T | 1] then 0-pad.
    onehotT = (cond.reshape(1, B) ==
               jnp.arange(NUM_COND, dtype=cond.dtype).reshape(NUM_COND, 1)
               ).astype(jnp.float32)                                  # (NUM_COND, B)
    inT = jnp.concatenate([x.astype(jnp.float32).T,                   # (layer_dim, B)
                           t.astype(jnp.float32).reshape(B, 1).T,     # (1, B)
                           onehotT,
                           jnp.ones((1, B), jnp.float32)], axis=0)
    inT = jnp.pad(inT, ((0, in_feats - inT.shape[0]), (0, b_pad - B)))

    outT = _featmajor_forward(inT, prep, tb)
    return outT[:, :B].T                                              # (B, layer_dim)


def integrate(y, cond, prep, t_max=1.0, dt=0.1, batch_tile=DEFAULT_BATCH_TILE):
    """Euler ODE integration, state kept feature-major/padded across steps."""
    # TODO(synk): fuse all integration steps into one pallas_call (weights DMA'd
    #             once, state resident in VMEM) instead of one launch per step.
    B, layer_dim = y.shape
    in_feats = prep["w1cT"].shape[1]
    tb, b_pad = _choose_tiles(B, batch_tile)

    onehotT = (cond.reshape(1, B) ==
               jnp.arange(NUM_COND, dtype=cond.dtype).reshape(NUM_COND, 1)
               ).astype(jnp.float32)
    onehotT = jnp.pad(onehotT, ((0, 0), (0, b_pad - B)))
    onesT = jnp.pad(jnp.ones((1, B), jnp.float32), ((0, 0), (0, b_pad - B)))
    tail = jnp.zeros((in_feats - layer_dim - 2 - NUM_COND, b_pad), jnp.float32)

    yT = jnp.pad(y.astype(jnp.float32).T, ((0, 0), (0, b_pad - B)))
    for time in np.arange(0.0, t_max, dt):
        tT = jnp.full((1, b_pad), float(time), jnp.float32)
        inT = jnp.concatenate([yT, tT, onehotT, onesT, tail], axis=0)
        yT = yT + _featmajor_forward(inT, prep, tb) * dt
    return yT[:, :B].T


def init_params(key, layer_dim=LAYER_DIM):
    """Deterministic synthetic parameters (shapes match the PyTorch module)."""
    in_dim = layer_dim + 1 + COND_EMB_SIZE
    dims = [(in_dim, HIDDEN), (HIDDEN, HIDDEN), (HIDDEN, HIDDEN),
            (HIDDEN, HIDDEN), (HIDDEN, layer_dim)]
    keys = jax.random.split(key, 2 * len(dims) + 1)
    params = {}
    for i, (din, dout) in enumerate(dims, start=1):
        kw, kb = keys[2 * (i - 1)], keys[2 * (i - 1) + 1]
        bound = 1.0 / jnp.sqrt(din)
        params[f"w{i}"] = jax.random.uniform(
            kw, (din, dout), jnp.float32, -bound, bound)
        params[f"b{i}"] = jax.random.uniform(
            kb, (dout,), jnp.float32, -bound, bound)
    # nn.Embedding(5, COND_EMB_SIZE): N(0, 1) init
    params["emb"] = jax.random.normal(keys[-1], (NUM_COND, COND_EMB_SIZE), jnp.float32)
    return params


def reference_forward(x, t, cond, params):
    """Pure-JAX reference of the PyTorch forward (float32)."""
    cond_emb = jnp.take(params["emb"], cond, axis=0)
    h = jnp.concatenate([x, t, cond_emb], axis=1)
    for i in range(1, 5):
        h = h @ params[f"w{i}"] + params[f"b{i}"]
        h = jnp.where(h > 0, h, NEG_SLOPE * h)
    return h @ params["w5"] + params["b5"]


def _check(B, params, prep, key):
    k_x, k_t, k_c = jax.random.split(key, 3)
    x = jax.random.normal(k_x, (B, LAYER_DIM), jnp.float32)
    t = jax.random.uniform(k_t, (B, 1), jnp.float32)
    cond = jax.random.randint(k_c, (B,), 0, NUM_COND, jnp.int32)

    out = jax.block_until_ready(flow_matching_cond_forward(x, t, cond, prep))
    ref = reference_forward(x, t, cond, params)
    assert out.shape == (B, LAYER_DIM)
    err = float(jnp.max(jnp.abs(out - ref)))
    # Tolerance covers bf16 MXU operands (with f32 accumulation) vs the f32
    # reference, which is itself a divergence already accepted relative to the
    # PyTorch float64 module.
    assert jnp.allclose(out, ref, atol=5e-2, rtol=5e-2), \
        f"mismatch vs reference (B={B}, max abs err {err})"


if __name__ == "__main__":
    key = jax.random.PRNGKey(0)
    k_params, k_small, k_big, k_int = jax.random.split(key, 4)

    params = init_params(k_params, LAYER_DIM)
    prep = prepare_params(params)

    # Small demo batch (single grid step, padded 8 -> 128).
    _check(8, params, prep, k_small)
    # Multi-tile batch with a tail (300 -> 512 padded, 2 parallel grid steps).
    _check(300, params, prep, k_big)

    # Tiny integrate() smoke test (2 Euler steps) vs a pure-JAX reference loop.
    B = 16
    kx, kc = jax.random.split(k_int)
    y0 = jax.random.normal(kx, (B, LAYER_DIM), jnp.float32)
    cond = jax.random.randint(kc, (B,), 0, NUM_COND, jnp.int32)
    y = jax.block_until_ready(integrate(y0, cond, prep, t_max=1.0, dt=0.5))
    y_ref = y0
    for time in np.arange(0.0, 1.0, 0.5):
        tt = jnp.full((B, 1), float(time), jnp.float32)
        y_ref = y_ref + reference_forward(y_ref, tt, cond, params) * 0.5
    assert y.shape == (B, LAYER_DIM)
    assert jnp.allclose(y, y_ref, atol=1e-1, rtol=1e-1)

    print("KERNEL_OK")
</pallas_src>

<mosaic_0001>
module attributes {stable_mosaic.version = 11 : i64} {
  func.func @mlp_kernel(%arg0: i32, %arg1: memref<16x128xf32, #tpu.memory_space<vmem>>, %arg2: memref<64x16xbf16, #tpu.memory_space<vmem>>, %arg3: memref<3x64x64xbf16, #tpu.memory_space<vmem>>, %arg4: memref<3x64x1xf32, #tpu.memory_space<vmem>>, %arg5: memref<8x64xbf16, #tpu.memory_space<vmem>>, %arg6: memref<8x1xf32, #tpu.memory_space<vmem>>, %arg7: memref<8x128xf32, #tpu.memory_space<vmem>>) attributes {dimension_semantics = [#tpu.dimension_semantics<parallel>], iteration_bounds = array<i64: 1>, scalar_prefetch = 0 : i64, scratch_operands = 0 : i64, tpu.core_type = #tpu.core_type<tc>, window_params = [{transform_indices = @transform_0, window_bounds = array<i64: 16, 128>}, {pipeline_mode = #tpu.pipeline_mode<synchronous>, transform_indices = @transform_1, window_bounds = array<i64: 64, 16>}, {pipeline_mode = #tpu.pipeline_mode<synchronous>, transform_indices = @transform_2, window_bounds = array<i64: 3, 64, 64>}, {pipeline_mode = #tpu.pipeline_mode<synchronous>, transform_indices = @transform_3, window_bounds = array<i64: 3, 64, 1>}, {pipeline_mode = #tpu.pipeline_mode<synchronous>, transform_indices = @transform_4, window_bounds = array<i64: 8, 64>}, {pipeline_mode = #tpu.pipeline_mode<synchronous>, transform_indices = @transform_5, window_bounds = array<i64: 8, 1>}, {transform_indices = @transform_6, window_bounds = array<i64: 8, 128>}]} {
    %c0 = arith.constant 0 : index
    %c0_0 = arith.constant 0 : index
    %0 = vector.load %arg1[%c0, %c0_0] : memref<16x128xf32, #tpu.memory_space<vmem>>, vector<16x128xf32>
    %1 = arith.truncf %0 : vector<16x128xf32> to vector<16x128xbf16>
    %c0_1 = arith.constant 0 : index
    %c0_2 = arith.constant 0 : index
    %2 = vector.load %arg2[%c0_1, %c0_2] : memref<64x16xbf16, #tpu.memory_space<vmem>>, vector<64x16xbf16>
    %cst = arith.constant dense<0.000000e+00> : vector<64x128xf32>
    %3 = tpu.matmul %2, %1, %cst {dimension_numbers = #tpu.dot_dimension_numbers<[1], [0], [0], [1], [0, 0, 1, 1], [], []>} : vector<64x16xbf16>, vector<16x128xbf16>, vector<64x128xf32> -> vector<64x128xf32>
    %cst_3 = arith.constant 0.00999999977 : f32
    %4 = vector.broadcast %cst_3 : f32 to vector<64x128xf32>
    %5 = arith.mulf %4, %3 : vector<64x128xf32>
    %6 = arith.maximumf %3, %5 : vector<64x128xf32>
    %c0_4 = arith.constant 0 : index
    %c0_5 = arith.constant 0 : index
    %c0_6 = arith.constant 0 : index
    %7 = vector.load %arg3[%c0_4, %c0_5, %c0_6] : memref<3x64x64xbf16, #tpu.memory_space<vmem>>, vector<1x64x64xbf16>
    %8 = vector.shape_cast %7 : vector<1x64x64xbf16> to vector<64x64xbf16>
    %9 = arith.truncf %6 : vector<64x128xf32> to vector<64x128xbf16>
    %cst_7 = arith.constant dense<0.000000e+00> : vector<64x128xf32>
    %10 = tpu.matmul %8, %9, %cst_7 {dimension_numbers = #tpu.dot_dimension_numbers<[1], [0], [0], [1], [0, 0, 1, 1], [], []>} : vector<64x64xbf16>, vector<64x128xbf16>, vector<64x128xf32> -> vector<64x128xf32>
    %c0_8 = arith.constant 0 : index
    %c0_9 = arith.constant 0 : index
    %c0_10 = arith.constant 0 : index
    %11 = vector.load %arg4[%c0_8, %c0_9, %c0_10] : memref<3x64x1xf32, #tpu.memory_space<vmem>>, vector<1x64x1xf32>
    %12 = vector.shape_cast %11 : vector<1x64x1xf32> to vector<64x1xf32>
    %13 = vector.broadcast %12 : vector<64x1xf32> to vector<64x128xf32>
    %14 = arith.addf %10, %13 : vector<64x128xf32>
    %cst_11 = arith.constant 0.00999999977 : f32
    %15 = vector.broadcast %cst_11 : f32 to vector<64x128xf32>
    %16 = arith.mulf %15, %14 : vector<64x128xf32>
    %17 = arith.maximumf %14, %16 : vector<64x128xf32>
    %c1 = arith.constant 1 : index
    %c0_12 = arith.constant 0 : index
    %c0_13 = arith.constant 0 : index
    %18 = vector.load %arg3[%c1, %c0_12, %c0_13] : memref<3x64x64xbf16, #tpu.memory_space<vmem>>, vector<1x64x64xbf16>
    %19 = vector.shape_cast %18 : vector<1x64x64xbf16> to vector<64x64xbf16>
    %20 = arith.truncf %17 : vector<64x128xf32> to vector<64x128xbf16>
    %cst_14 = arith.constant dense<0.000000e+00> : vector<64x128xf32>
    %21 = tpu.matmul %19, %20, %cst_14 {dimension_numbers = #tpu.dot_dimension_numbers<[1], [0], [0], [1], [0, 0, 1, 1], [], []>} : vector<64x64xbf16>, vector<64x128xbf16>, vector<64x128xf32> -> vector<64x128xf32>
    %c1_15 = arith.constant 1 : index
    %c0_16 = arith.constant 0 : index
    %c0_17 = arith.constant 0 : index
    %22 = vector.load %arg4[%c1_15, %c0_16, %c0_17] : memref<3x64x1xf32, #tpu.memory_space<vmem>>, vector<1x64x1xf32>
    %23 = vector.shape_cast %22 : vector<1x64x1xf32> to vector<64x1xf32>
    %24 = vector.broadcast %23 : vector<64x1xf32> to vector<64x128xf32>
    %25 = arith.addf %21, %24 : vector<64x128xf32>
    %cst_18 = arith.constant 0.00999999977 : f32
    %26 = vector.broadcast %cst_18 : f32 to vector<64x128xf32>
    %27 = arith.mulf %26, %25 : vector<64x128xf32>
    %28 = arith.maximumf %25, %27 : vector<64x128xf32>
    %c2 = arith.constant 2 : index
    %c0_19 = arith.constant 0 : index
    %c0_20 = arith.constant 0 : index
    %29 = vector.load %arg3[%c2, %c0_19, %c0_20] : memref<3x64x64xbf16, #tpu.memory_space<vmem>>, vector<1x64x64xbf16>
    %30 = vector.shape_cast %29 : vector<1x64x64xbf16> to vector<64x64xbf16>
    %31 = arith.truncf %28 : vector<64x128xf32> to vector<64x128xbf16>
    %cst_21 = arith.constant dense<0.000000e+00> : vector<64x128xf32>
    %32 = tpu.matmul %30, %31, %cst_21 {dimension_numbers = #tpu.dot_dimension_numbers<[1], [0], [0], [1], [0, 0, 1, 1], [], []>} : vector<64x64xbf16>, vector<64x128xbf16>, vector<64x128xf32> -> vector<64x128xf32>
    %c2_22 = arith.constant 2 : index
    %c0_23 = arith.constant 0 : index
    %c0_24 = arith.constant 0 : index
    %33 = vector.load %arg4[%c2_22, %c0_23, %c0_24] : memref<3x64x1xf32, #tpu.memory_space<vmem>>, vector<1x64x1xf32>
    %34 = vector.shape_cast %33 : vector<1x64x1xf32> to vector<64x1xf32>
    %35 = vector.broadcast %34 : vector<64x1xf32> to vector<64x128xf32>
    %36 = arith.addf %32, %35 : vector<64x128xf32>
    %cst_25 = arith.constant 0.00999999977 : f32
    %37 = vector.broadcast %cst_25 : f32 to vector<64x128xf32>
    %38 = arith.mulf %37, %36 : vector<64x128xf32>
    %39 = arith.maximumf %36, %38 : vector<64x128xf32>
    %c0_26 = arith.constant 0 : index
    %c0_27 = arith.constant 0 : index
    %40 = vector.load %arg5[%c0_26, %c0_27] : memref<8x64xbf16, #tpu.memory_space<vmem>>, vector<8x64xbf16>
    %41 = arith.truncf %39 : vector<64x128xf32> to vector<64x128xbf16>
    %cst_28 = arith.constant dense<0.000000e+00> : vector<8x128xf32>
    %42 = tpu.matmul %40, %41, %cst_28 {dimension_numbers = #tpu.dot_dimension_numbers<[1], [0], [0], [1], [0, 0, 1, 1], [], []>} : vector<8x64xbf16>, vector<64x128xbf16>, vector<8x128xf32> -> vector<8x128xf32>
    %c0_29 = arith.constant 0 : index
    %c0_30 = arith.constant 0 : index
    %43 = vector.load %arg6[%c0_29, %c0_30] : memref<8x1xf32, #tpu.memory_space<vmem>>, vector<8x1xf32>
    %44 = vector.broadcast %43 : vector<8x1xf32> to vector<8x128xf32>
    %45 = arith.addf %42, %44 : vector<8x128xf32>
    %c0_31 = arith.constant 0 : index
    %c0_32 = arith.constant 0 : index
    %46 = vector.load %arg7[%c0_31, %c0_32] : memref<8x128xf32, #tpu.memory_space<vmem>>, vector<8x128xf32>
    tpu.vector_store %arg7[%c0_31, %c0_32], %45 {strides = array<i32>} : memref<8x128xf32, #tpu.memory_space<vmem>>, vector<8x128xf32>,
    return
  }
  func.func @transform_0(%arg0: i32) -> (i32, i32) {
    %c0_i32 = arith.constant 0 : i32
    %c0_i32_0 = arith.constant 0 : i32
    return %c0_i32, %arg0 : i32, i32
  }
  func.func @transform_1(%arg0: i32) -> (i32, i32) {
    %c0_i32 = arith.constant 0 : i32
    %c0_i32_0 = arith.constant 0 : i32
    %c0_i32_1 = arith.constant 0 : i32
    return %c0_i32, %c0_i32_0 : i32, i32
  }
  func.func @transform_2(%arg0: i32) -> (i32, i32, i32) {
    %c0_i32 = arith.constant 0 : i32
    %c0_i32_0 = arith.constant 0 : i32
    %c0_i32_1 = arith.constant 0 : i32
    %c0_i32_2 = arith.constant 0 : i32
    return %c0_i32, %c0_i32_0, %c0_i32_1 : i32, i32, i32
  }
  func.func @transform_3(%arg0: i32) -> (i32, i32, i32) {
    %c0_i32 = arith.constant 0 : i32
    %c0_i32_0 = arith.constant 0 : i32
    %c0_i32_1 = arith.constant 0 : i32
    %c0_i32_2 = arith.constant 0 : i32
    return %c0_i32, %c0_i32_0, %c0_i32_1 : i32, i32, i32
  }
  func.func @transform_4(%arg0: i32) -> (i32, i32) {
    %c0_i32 = arith.constant 0 : i32
    %c0_i32_0 = arith.constant 0 : i32
    %c0_i32_1 = arith.constant 0 : i32
    return %c0_i32, %c0_i32_0 : i32, i32
  }
  func.func @transform_5(%arg0: i32) -> (i32, i32) {
    %c0_i32 = arith.constant 0 : i32
    %c0_i32_0 = arith.constant 0 : i32
    %c0_i32_1 = arith.constant 0 : i32
    return %c0_i32, %c0_i32_0 : i32, i32
  }
  func.func @transform_6(%arg0: i32) -> (i32, i32) {
    %c0_i32 = arith.constant 0 : i32
    %c0_i32_0 = arith.constant 0 : i32
    return %c0_i32, %arg0 : i32, i32
  }
}

</mosaic_0001>

<llo_original>
// kernel: _featmajor_forward.1
$region0: #{_featmajor_forward.1}
  #allocation0 [shape = 'u32[]', space=smem, size = 0x4, offset = 0x4, fixed_abs, tag = 'smem constant byte address 0x4 - core index']
  #allocation1 [shape = 'u32[72,128]{1,0:T(1,128)}', space=vmem, size = 0x9000, scoped, tag = 'internal scratch']
  %s0 = inlined_call_operand.vmem [shape: f32[16,128], index: 0, kind: input, shape index: {}]
  %s1 = inlined_call_operand.vmem [shape: bf16[64,16], index: 1, kind: input, shape index: {}]
  %s2 = inlined_call_operand.vmem [shape: bf16[3,64,64], index: 2, kind: input, shape index: {}]
  %s3 = inlined_call_operand.vmem [shape: f32[3,64,1], index: 3, kind: input, shape index: {}]
  %s4 = inlined_call_operand.vmem [shape: bf16[8,64], index: 4, kind: input, shape index: {}]
  %s5 = inlined_call_operand.vmem [shape: f32[8,1], index: 5, kind: input, shape index: {}]
  %s6 = inlined_call_operand.hbm [shape: f32[8,128], index: 6, kind: output, shape index: {}]
  %s7 = sld [smem:[#allocation0]]
  $region34: #{_featmajor_forward.1} parent=0
    _
  %s9 = ssub.s32 1, %s7
  %s10 = scalar_select 0, %s9, %s7
  $region1: #{_featmajor_forward.1} parent=0
    #allocation2 [shape = 'u8[4096]{0}', space=vmem, size = 0x1000, scoped, tag = 'output window, operand 0, single buffered']
    #allocation3 [shape = 's32[1]{0}', space=sflag, size = 0x4, scoped, tag = 'scoped memory for _featmajor_forward.1']
    %11 = vsyncpa [#allocation3], 0
    // Predicated region
    $region2: #{_featmajor_forward.1} parent=1 // pred_check
      _
    $region3: #{_featmajor_forward.1} parent=1 // pred_check_branch
      %13 = sbr.rel (0) target = $region5
    $region4: #{_featmajor_forward.1} parent=1 // pred_region
      _
    $region5: #{_featmajor_forward.1} parent=1 // pred_fallthru
      _
    // Predicated region
    $region6: #{_featmajor_forward.1} parent=1 // pred_check
      _
    $region7: #{_featmajor_forward.1} parent=1 // pred_check_branch
      %15 = sbr.rel (0) target = $region9
    $region8: #{_featmajor_forward.1} parent=1 // pred_region
      _
    $region9: #{_featmajor_forward.1} parent=1 // pred_fallthru
      _
    // Predicated region
    $region10: #{_featmajor_forward.1} parent=1 // pred_check
      _
    $region11: #{_featmajor_forward.1} parent=1 // pred_check_branch
      %17 = sbr.rel (0) target = $region13
    $region12: #{_featmajor_forward.1} parent=1 // pred_region
      _
    $region13: #{_featmajor_forward.1} parent=1 // pred_fallthru
      _
    // Predicated region
    $region14: #{_featmajor_forward.1} parent=1 // pred_check
      _
    $region15: #{_featmajor_forward.1} parent=1 // pred_check_branch
      %19 = sbr.rel (0) target = $region17
    $region16: #{_featmajor_forward.1} parent=1 // pred_region
      _
    $region17: #{_featmajor_forward.1} parent=1 // pred_fallthru
      _
    // Predicated region
    $region18: #{_featmajor_forward.1} parent=1 // pred_check
      _
    $region19: #{_featmajor_forward.1} parent=1 // pred_check_branch
      %21 = sbr.rel (0) target = $region21
    $region20: #{_featmajor_forward.1} parent=1 // pred_region
      _
    $region21: #{_featmajor_forward.1} parent=1 // pred_fallthru
      _
    // Predicated region
    $region22: #{_featmajor_forward.1} parent=1 // pred_check
      _
    $region23: #{_featmajor_forward.1} parent=1 // pred_check_branch
      %23 = sbr.rel (0) target = $region25
    $region24: #{_featmajor_forward.1} parent=1 // pred_region
      _
    $region25: #{_featmajor_forward.1} parent=1 // pred_fallthru
      _
    %v25 = vld [vmem:[%s0] sm:$0xff]
    %v26 = vld [vmem:[%s0 + $0x8] sm:$0xff]
    %v27 = vpack.c.bf16 %v26, %v25
    %v28 = vld [vmem:[%s1] sm:$0xf]
    %v29 = vld [vmem:[%s1 + $0x4] sm:$0xf]
    %v30 = vld [vmem:[%s1 + $0x8] sm:$0xf]
    %v31 = vld [vmem:[%s1 + $0xc] sm:$0xf]
    %v32 = vld [vmem:[%s1 + $0x10] sm:$0xf]
    %v33 = vld [vmem:[%s1 + $0x14] sm:$0xf]
    %v34 = vld [vmem:[%s1 + $0x18] sm:$0xf]
    %v35 = vld [vmem:[%s1 + $0x1c] sm:$0xf]
    %v44 = vunpack.c.l.b16 %v28
    %v45 = vunpack.c.l.b16 %v29
    %v46 = vunpack.c.l.b16 %v30
    %v47 = vunpack.c.l.b16 %v31
    %v48 = vunpack.c.l.b16 %v32
    %v49 = vunpack.c.l.b16 %v33
    %v50 = vunpack.c.l.b16 %v34
    %v51 = vunpack.c.l.b16 %v35
    %v52 = vpack.c.b16 %v45, %v44
    %v53 = vpack.c.b16 %v47, %v46
    %v54 = vpack.c.b16 %v49, %v48
    %v55 = vpack.c.b16 %v51, %v50
    %vm56 = vcmask 130048
    %v58 = vsel %vm56, %v52, 0
    %v61 = vsel %vm56, %v53, 0
    %v64 = vsel %vm56, %v54, 0
    %v67 = vsel %vm56, %v55, 0
    %69 = vmatpush.bf16.msra.mxu0 0
    %70 = vmatpush.bf16.msra.mxu0 0
    %71 = vmatpush.bf16.msra.mxu0 0
    %72 = vmatpush.bf16.msra.mxu0 0
    %73 = vmatpush.bf16.msra.mxu0 0
    %74 = vmatpush.bf16.msra.mxu0 0
    %75 = vmatpush.bf16.msra.mxu0 0
    %76 = vmatpush.bf16.msra.mxu0 %v27
    %77 = vmatmul.bf16.gmra.mxu0 %v58
    %v78 = vpop.f32.mrf.mxu0
    %v79 = vadd.f32 0.0, %v78
    %v80 = vpop.f32.mrf.mxu0
    %v81 = vadd.f32 0.0, %v80
    %82 = vmatmul.bf16.gmra.mxu0 %v61
    %v83 = vpop.f32.mrf.mxu0
    %v84 = vadd.f32 0.0, %v83
    %v85 = vpop.f32.mrf.mxu0
    %v86 = vadd.f32 0.0, %v85
    %87 = vmatmul.bf16.gmra.mxu0 %v64
    %v88 = vpop.f32.mrf.mxu0
    %v89 = vadd.f32 0.0, %v88
    %v90 = vpop.f32.mrf.mxu0
    %v91 = vadd.f32 0.0, %v90
    %92 = vmatmul.bf16.gmra.mxu0 %v67
    %v93 = vpop.f32.mrf.mxu0
    %v94 = vadd.f32 0.0, %v93
    %v95 = vpop.f32.mrf.mxu0
    %v96 = vadd.f32 0.0, %v95
    %97 = vdwg.mxu0
    %v98 = vmul.f32 %v79, 0.01
    %v99 = vmul.f32 %v81, 0.01
    %v100 = vmul.f32 %v84, 0.01
    %v101 = vmul.f32 %v86, 0.01
    %v102 = vmul.f32 %v89, 0.01
    %v103 = vmul.f32 %v91, 0.01
    %v104 = vmul.f32 %v94, 0.01
    %v105 = vmul.f32 %v96, 0.01
    %v106 = vmax.f32 %v79, %v98
    %v107 = vmax.f32 %v81, %v99
    %v108 = vmax.f32 %v84, %v100
    %v109 = vmax.f32 %v86, %v101
    %v110 = vmax.f32 %v89, %v102
    %v111 = vmax.f32 %v91, %v103
    %v112 = vmax.f32 %v94, %v104
    %v113 = vmax.f32 %v96, %v105
    %v114 = vld [vmem:[%s2] sm:$0xf]
    %v115 = vld [vmem:[%s2 + $0x4] sm:$0xf]
    %v116 = vld [vmem:[%s2 + $0x8] sm:$0xf]
    %v117 = vld [vmem:[%s2 + $0xc] sm:$0xf]
    %v118 = vld [vmem:[%s2 + $0x10] sm:$0xf]
    %v119 = vld [vmem:[%s2 + $0x14] sm:$0xf]
    %v120 = vld [vmem:[%s2 + $0x18] sm:$0xf]
    %v121 = vld [vmem:[%s2 + $0x1c] sm:$0xf]
    %v122 = vpack.c.bf16 %v107, %v106
    %v123 = vpack.c.bf16 %v109, %v108
    %v124 = vpack.c.bf16 %v111, %v110
    %v125 = vpack.c.bf16 %v113, %v112
    %v126 = vld [vmem:[%s3] sm:$0xff]
    %v127 = vld [vmem:[%s3 + $0x8] sm:$0xff]
    %v128 = vld [vmem:[%s3 + $0x10] sm:$0xff]
    %v129 = vld [vmem:[%s3 + $0x18] sm:$0xff]
    %v130 = vld [vmem:[%s3 + $0x20] sm:$0xff]
    %v131 = vld [vmem:[%s3 + $0x28] sm:$0xff]
    %v132 = vld [vmem:[%s3 + $0x30] sm:$0xff]
    %v133 = vld [vmem:[%s3 + $0x38] sm:$0xff]
    %135 = vset.pattern.permute.xlu0 0
    %136 = vperm.xlu0 %135, %v126
    %v137 = vpop.permute.xlu0 %136
    %140 = vset.pattern.permute.xlu0 0
    %141 = vperm.xlu0 %140, %v127
    %v142 = vpop.permute.xlu0 %141
    %145 = vset.pattern.permute.xlu0 0
    %146 = vperm.xlu0 %145, %v128
    %v147 = vpop.permute.xlu0 %146
    %150 = vset.pattern.permute.xlu0 0
    %151 = vperm.xlu0 %150, %v129
    %v152 = vpop.permute.xlu0 %151
    %155 = vset.pattern.permute.xlu0 0
    %156 = vperm.xlu0 %155, %v130
    %v157 = vpop.permute.xlu0 %156
    %160 = vset.pattern.permute.xlu0 0
    %161 = vperm.xlu0 %160, %v131
    %v162 = vpop.permute.xlu0 %161
    %165 = vset.pattern.permute.xlu0 0
    %166 = vperm.xlu0 %165, %v132
    %v167 = vpop.permute.xlu0 %166
    %170 = vset.pattern.permute.xlu0 0
    %171 = vperm.xlu0 %170, %v133
    %v172 = vpop.permute.xlu0 %171
    %v182 = vunpack.c.l.b16 %v114
    %v183 = vunpack.c.l.b16 %v115
    %v184 = vunpack.c.l.b16 %v116
    %v185 = vunpack.c.l.b16 %v117
    %v186 = vunpack.c.l.b16 %v118
    %v187 = vunpack.c.l.b16 %v119
    %v188 = vunpack.c.l.b16 %v120
    %v189 = vunpack.c.l.b16 %v121
    %v190 = vpack.c.b16 %v183, %v182
    %v191 = vpack.c.b16 %v185, %v184
    %v192 = vpack.c.b16 %v187, %v186
    %v193 = vpack.c.b16 %v189, %v188
    %vm194 = vcmask 523264
    %v196 = vsel %vm194, %v190, 0
    %v199 = vsel %vm194, %v191, 0
    %v202 = vsel %vm194, %v192, 0
    %v205 = vsel %vm194, %v193, 0
    %207 = vmatpush.bf16.msra.mxu0 0
    %208 = vmatpush.bf16.msra.mxu0 0
    %209 = vmatpush.bf16.msra.mxu0 0
    %210 = vmatpush.bf16.msra.mxu0 0
    %211 = vmatpush.bf16.msra.mxu0 %v125
    %212 = vmatpush.bf16.msra.mxu0 %v124
    %213 = vmatpush.bf16.msra.mxu0 %v123
    %214 = vmatpush.bf16.msra.mxu0 %v122
    %215 = vmatmul.bf16.gmra.mxu0 %v196
    %v216 = vpop.f32.mrf.mxu0
    %v217 = vadd.f32 %v137, %v216
    %v218 = vpop.f32.mrf.mxu0
    %v219 = vadd.f32 %v142, %v218
    %220 = vmatmul.bf16.gmra.mxu0 %v199
    %v221 = vpop.f32.mrf.mxu0
    %v222 = vadd.f32 %v147, %v221
    %v223 = vpop.f32.mrf.mxu0
    %v224 = vadd.f32 %v152, %v223
    %225 = vmatmul.bf16.gmra.mxu0 %v202
    %v226 = vpop.f32.mrf.mxu0
    %v227 = vadd.f32 %v157, %v226
    %v228 = vpop.f32.mrf.mxu0
    %v229 = vadd.f32 %v162, %v228
    %230 = vmatmul.bf16.gmra.mxu0 %v205
    %v231 = vpop.f32.mrf.mxu0
    %v232 = vadd.f32 %v167, %v231
    %v233 = vpop.f32.mrf.mxu0
    %v234 = vadd.f32 %v172, %v233
    %235 = vdwg.mxu0
    %v236 = vmul.f32 %v217, 0.01
    %v237 = vmul.f32 %v219, 0.01
    %v238 = vmul.f32 %v222, 0.01
    %v239 = vmul.f32 %v224, 0.01
    %v240 = vmul.f32 %v227, 0.01
    %v241 = vmul.f32 %v229, 0.01
    %v242 = vmul.f32 %v232, 0.01
    %v243 = vmul.f32 %v234, 0.01
    %v244 = vmax.f32 %v217, %v236
    %v245 = vmax.f32 %v219, %v237
    %v246 = vmax.f32 %v222, %v238
    %v247 = vmax.f32 %v224, %v239
    %v248 = vmax.f32 %v227, %v240
    %v249 = vmax.f32 %v229, %v241
    %v250 = vmax.f32 %v232, %v242
    %v251 = vmax.f32 %v234, %v243
    %s252 = scalar_lea.vmem %s2, 32
    %v253 = vld [vmem:[%s252] sm:$0xf]
    %v254 = vld [vmem:[%s252 + $0x4] sm:$0xf]
    %v255 = vld [vmem:[%s252 + $0x8] sm:$0xf]
    %v256 = vld [vmem:[%s252 + $0xc] sm:$0xf]
    %v257 = vld [vmem:[%s252 + $0x10] sm:$0xf]
    %v258 = vld [vmem:[%s252 + $0x14] sm:$0xf]
    %v259 = vld [vmem:[%s252 + $0x18] sm:$0xf]
    %v260 = vld [vmem:[%s252 + $0x1c] sm:$0xf]
    %v261 = vpack.c.bf16 %v245, %v244
    %v262 = vpack.c.bf16 %v247, %v246
    %v263 = vpack.c.bf16 %v249, %v248
    %v264 = vpack.c.bf16 %v251, %v250
    %s265 = scalar_lea.vmem %s3, 64
    %v266 = vld [vmem:[%s265] sm:$0xff]
    %v267 = vld [vmem:[%s265 + $0x8] sm:$0xff]
    %v268 = vld [vmem:[%s265 + $0x10] sm:$0xff]
    %v269 = vld [vmem:[%s265 + $0x18] sm:$0xff]
    %v270 = vld [vmem:[%s265 + $0x20] sm:$0xff]
    %v271 = vld [vmem:[%s265 + $0x28] sm:$0xff]
    %v272 = vld [vmem:[%s265 + $0x30] sm:$0xff]
    %v273 = vld [vmem:[%s265 + $0x38] sm:$0xff]
    %275 = vset.pattern.permute.xlu0 0
    %276 = vperm.xlu0 %275, %v266
    %v277 = vpop.permute.xlu0 %276
    %280 = vset.pattern.permute.xlu0 0
    %281 = vperm.xlu0 %280, %v267
    %v282 = vpop.permute.xlu0 %281
    %285 = vset.pattern.permute.xlu0 0
    %286 = vperm.xlu0 %285, %v268
    %v287 = vpop.permute.xlu0 %286
    %290 = vset.pattern.permute.xlu0 0
    %291 = vperm.xlu0 %290, %v269
    %v292 = vpop.permute.xlu0 %291
    %295 = vset.pattern.permute.xlu0 0
    %296 = vperm.xlu0 %295, %v270
    %v297 = vpop.permute.xlu0 %296
    %300 = vset.pattern.permute.xlu0 0
    %301 = vperm.xlu0 %300, %v271
    %v302 = vpop.permute.xlu0 %301
    %305 = vset.pattern.permute.xlu0 0
    %306 = vperm.xlu0 %305, %v272
    %v307 = vpop.permute.xlu0 %306
    %310 = vset.pattern.permute.xlu0 0
    %311 = vperm.xlu0 %310, %v273
    %v312 = vpop.permute.xlu0 %311
    %v322 = vunpack.c.l.b16 %v253
    %v323 = vunpack.c.l.b16 %v254
    %v324 = vunpack.c.l.b16 %v255
    %v325 = vunpack.c.l.b16 %v256
    %v326 = vunpack.c.l.b16 %v257
    %v327 = vunpack.c.l.b16 %v258
    %v328 = vunpack.c.l.b16 %v259
    %v329 = vunpack.c.l.b16 %v260
    %v330 = vpack.c.b16 %v323, %v322
    %v331 = vpack.c.b16 %v325, %v324
    %v332 = vpack.c.b16 %v327, %v326
    %v333 = vpack.c.b16 %v329, %v328
    %v335 = vsel %vm194, %v330, 0
    %v338 = vsel %vm194, %v331, 0
    %v341 = vsel %vm194, %v332, 0
    %v344 = vsel %vm194, %v333, 0
    %346 = vmatpush.bf16.msra.mxu0 0
    %347 = vmatpush.bf16.msra.mxu0 0
    %348 = vmatpush.bf16.msra.mxu0 0
    %349 = vmatpush.bf16.msra.mxu0 0
    %350 = vmatpush.bf16.msra.mxu0 %v264
    %351 = vmatpush.bf16.msra.mxu0 %v263
    %352 = vmatpush.bf16.msra.mxu0 %v262
    %353 = vmatpush.bf16.msra.mxu0 %v261
    %354 = vmatmul.bf16.gmra.mxu0 %v335
    %v355 = vpop.f32.mrf.mxu0
    %v356 = vadd.f32 %v277, %v355
    %v357 = vpop.f32.mrf.mxu0
    %v358 = vadd.f32 %v282, %v357
    %359 = vmatmul.bf16.gmra.mxu0 %v338
    %v360 = vpop.f32.mrf.mxu0
    %v361 = vadd.f32 %v287, %v360
    %v362 = vpop.f32.mrf.mxu0
    %v363 = vadd.f32 %v292, %v362
    %364 = vmatmul.bf16.gmra.mxu0 %v341
    %v365 = vpop.f32.mrf.mxu0
    %v366 = vadd.f32 %v297, %v365
    %v367 = vpop.f32.mrf.mxu0
    %v368 = vadd.f32 %v302, %v367
    %369 = vmatmul.bf16.gmra.mxu0 %v344
    %v370 = vpop.f32.mrf.mxu0
    %v371 = vadd.f32 %v307, %v370
    %v372 = vpop.f32.mrf.mxu0
    %v373 = vadd.f32 %v312, %v372
    %374 = vdwg.mxu0
    %v375 = vmul.f32 %v356, 0.01
    %v376 = vmul.f32 %v358, 0.01
    %v377 = vmul.f32 %v361, 0.01
    %v378 = vmul.f32 %v363, 0.01
    %v379 = vmul.f32 %v366, 0.01
    %v380 = vmul.f32 %v368, 0.01
    %v381 = vmul.f32 %v371, 0.01
    %v382 = vmul.f32 %v373, 0.01
    %v383 = vmax.f32 %v356, %v375
    %v384 = vmax.f32 %v358, %v376
    %v385 = vmax.f32 %v361, %v377
    %v386 = vmax.f32 %v363, %v378
    %v387 = vmax.f32 %v366, %v379
    %v388 = vmax.f32 %v368, %v380
    %v389 = vmax.f32 %v371, %v381
    %v390 = vmax.f32 %v373, %v382
    %s391 = scalar_lea.vmem %s2, 64
    %v392 = vld [vmem:[%s391] sm:$0xf]
    %v393 = vld [vmem:[%s391 + $0x4] sm:$0xf]
    %v394 = vld [vmem:[%s391 + $0x8] sm:$0xf]
    %v395 = vld [vmem:[%s391 + $0xc] sm:$0xf]
    %v396 = vld [vmem:[%s391 + $0x10] sm:$0xf]
    %v397 = vld [vmem:[%s391 + $0x14] sm:$0xf]
    %v398 = vld [vmem:[%s391 + $0x18] sm:$0xf]
    %v399 = vld [vmem:[%s391 + $0x1c] sm:$0xf]
    %v400 = vpack.c.bf16 %v384, %v383
    %v401 = vpack.c.bf16 %v386, %v385
    %v402 = vpack.c.bf16 %v388, %v387
    %v403 = vpack.c.bf16 %v390, %v389
    %s404 = scalar_lea.vmem %s3, 128
    %v405 = vld [vmem:[%s404] sm:$0xff]
    %v406 = vld [vmem:[%s404 + $0x8] sm:$0xff]
    %v407 = vld [vmem:[%s404 + $0x10] sm:$0xff]
    %v408 = vld [vmem:[%s404 + $0x18] sm:$0xff]
    %v409 = vld [vmem:[%s404 + $0x20] sm:$0xff]
    %v410 = vld [vmem:[%s404 + $0x28] sm:$0xff]
    %v411 = vld [vmem:[%s404 + $0x30] sm:$0xff]
    %v412 = vld [vmem:[%s404 + $0x38] sm:$0xff]
    %414 = vset.pattern.permute.xlu0 0
    %415 = vperm.xlu0 %414, %v405
    %v416 = vpop.permute.xlu0 %415
    %419 = vset.pattern.permute.xlu0 0
    %420 = vperm.xlu0 %419, %v406
    %v421 = vpop.permute.xlu0 %420
    %424 = vset.pattern.permute.xlu0 0
    %425 = vperm.xlu0 %424, %v407
    %v426 = vpop.permute.xlu0 %425
    %429 = vset.pattern.permute.xlu0 0
    %430 = vperm.xlu0 %429, %v408
    %v431 = vpop.permute.xlu0 %430
    %434 = vset.pattern.permute.xlu0 0
    %435 = vperm.xlu0 %434, %v409
    %v436 = vpop.permute.xlu0 %435
    %439 = vset.pattern.permute.xlu0 0
    %440 = vperm.xlu0 %439, %v410
    %v441 = vpop.permute.xlu0 %440
    %444 = vset.pattern.permute.xlu0 0
    %445 = vperm.xlu0 %444, %v411
    %v446 = vpop.permute.xlu0 %445
    %449 = vset.pattern.permute.xlu0 0
    %450 = vperm.xlu0 %449, %v412
    %v451 = vpop.permute.xlu0 %450
    %v461 = vunpack.c.l.b16 %v392
    %v462 = vunpack.c.l.b16 %v393
    %v463 = vunpack.c.l.b16 %v394
    %v464 = vunpack.c.l.b16 %v395
    %v465 = vunpack.c.l.b16 %v396
    %v466 = vunpack.c.l.b16 %v397
    %v467 = vunpack.c.l.b16 %v398
    %v468 = vunpack.c.l.b16 %v399
    %v469 = vpack.c.b16 %v462, %v461
    %v470 = vpack.c.b16 %v464, %v463
    %v471 = vpack.c.b16 %v466, %v465
    %v472 = vpack.c.b16 %v468, %v467
    %v474 = vsel %vm194, %v469, 0
    %v477 = vsel %vm194, %v470, 0
    %v480 = vsel %vm194, %v471, 0
    %v483 = vsel %vm194, %v472, 0
    %485 = vmatpush.bf16.msra.mxu0 0
    %486 = vmatpush.bf16.msra.mxu0 0
    %487 = vmatpush.bf16.msra.mxu0 0
    %488 = vmatpush.bf16.msra.mxu0 0
    %489 = vmatpush.bf16.msra.mxu0 %v403
    %490 = vmatpush.bf16.msra.mxu0 %v402
    %491 = vmatpush.bf16.msra.mxu0 %v401
    %492 = vmatpush.bf16.msra.mxu0 %v400
    %493 = vmatmul.bf16.gmra.mxu0 %v474
    %v494 = vpop.f32.mrf.mxu0
    %v495 = vadd.f32 %v416, %v494
    %v496 = vpop.f32.mrf.mxu0
    %v497 = vadd.f32 %v421, %v496
    %498 = vmatmul.bf16.gmra.mxu0 %v477
    %v499 = vpop.f32.mrf.mxu0
    %v500 = vadd.f32 %v426, %v499
    %v501 = vpop.f32.mrf.mxu0
    %v502 = vadd.f32 %v431, %v501
    %503 = vmatmul.bf16.gmra.mxu0 %v480
    %v504 = vpop.f32.mrf.mxu0
    %v505 = vadd.f32 %v436, %v504
    %v506 = vpop.f32.mrf.mxu0
    %v507 = vadd.f32 %v441, %v506
    %508 = vmatmul.bf16.gmra.mxu0 %v483
    %v509 = vpop.f32.mrf.mxu0
    %v510 = vadd.f32 %v446, %v509
    %v511 = vpop.f32.mrf.mxu0
    %v512 = vadd.f32 %v451, %v511
    %513 = vdwg.mxu0
    %v514 = vmul.f32 %v495, 0.01
    %v515 = vmul.f32 %v497, 0.01
    %v516 = vmul.f32 %v500, 0.01
    %v517 = vmul.f32 %v502, 0.01
    %v518 = vmul.f32 %v505, 0.01
    %v519 = vmul.f32 %v507, 0.01
    %v520 = vmul.f32 %v510, 0.01
    %v521 = vmul.f32 %v512, 0.01
    %v522 = vmax.f32 %v495, %v514
    %v523 = vmax.f32 %v497, %v515
    %v524 = vmax.f32 %v500, %v516
    %v525 = vmax.f32 %v502, %v517
    %v526 = vmax.f32 %v505, %v518
    %v527 = vmax.f32 %v507, %v519
    %v528 = vmax.f32 %v510, %v520
    %v529 = vmax.f32 %v512, %v521
    %v530 = vld [vmem:[%s4] sm:$0xf]
    %v531 = vpack.c.bf16 %v523, %v522
    %v532 = vpack.c.bf16 %v525, %v524
    %v533 = vpack.c.bf16 %v527, %v526
    %v534 = vpack.c.bf16 %v529, %v528
    %v535 = vld [vmem:[%s5] sm:$0xff]
    %537 = vset.pattern.permute.xlu0 0
    %538 = vperm.xlu0 %537, %v535
    %v539 = vpop.permute.xlu0 %538
    %v542 = vsel %vm194, %v530, 0
    %544 = vmatpush.bf16.msra.mxu0 0
    %545 = vmatpush.bf16.msra.mxu0 0
    %546 = vmatpush.bf16.msra.mxu0 0
    %547 = vmatpush.bf16.msra.mxu0 0
    %548 = vmatpush.bf16.msra.mxu0 %v534
    %549 = vmatpush.bf16.msra.mxu0 %v533
    %550 = vmatpush.bf16.msra.mxu0 %v532
    %551 = vmatpush.bf16.msra.mxu0 %v531
    %552 = vmatmul.bf16.gmra.mxu0 %v542
    %v553 = vpop.f32.mrf.mxu0
    %v554 = vadd.f32 %v539, %v553
    %v555 = vpop.f32.mrf.mxu0
    %556 = vdwg.mxu0
    %557 = vst [vmem:[#allocation2] sm:$0xff] %v554
    // Predicated region
    $region26: #{_featmajor_forward.1} parent=1 // pred_check
      _
    $region27: #{_featmajor_forward.1} parent=1 // pred_check_branch
      %559 = sbr.rel (0) target = $region29
    $region28: #{_featmajor_forward.1} parent=1 // pred_region
      %561 = vsyncadd [#allocation3], 0
      %s563 = sshll.u32 [#allocation2], 4
      %s564 = int_to_ptr.vmem [resolvable:$true] %s563
      %s565 = sshll.u32 %s6, 4
      %s566 = int_to_ptr.hbm [resolvable:$true] %s565
      %568 = dma.vmem_to_hbm [thread:$0]  %s564, 128, %s566, [#allocation3]
    $region29: #{_featmajor_forward.1} parent=1 // pred_fallthru
      _
    // Predicated region
    $region30: #{_featmajor_forward.1} parent=1 // pred_check
      _
    $region31: #{_featmajor_forward.1} parent=1 // pred_check_branch
      %570 = sbr.rel (0) target = $region33
    $region32: #{_featmajor_forward.1} parent=1 // pred_region
      %572 = dma.done [#allocation3], 128
    $region33: #{_featmajor_forward.1} parent=1 // pred_fallthru
      _
    %573 = vsyncpa [#allocation3], 1

</llo_original>
